<compile_context>
chip_gen: v6e
topology: v6e:2x2x1
jax: 0.10.0
libtpu: 0.0.40
codegen_flags: <defaults>
</compile_context>

<pallas_src>
import functools
import math

import jax
import jax.numpy as jnp
from jax import lax
from jax.experimental import pallas as pl
from jax.experimental.pallas import tpu as pltpu


# ---------------------------------------------------------------------------
# Helpers
# ---------------------------------------------------------------------------
def _round_up(x, m):
    return ((x + m - 1) // m) * m


def _pad2d(a, rows, cols):
    r, c = a.shape
    if r == rows and c == cols:
        return a
    return jnp.pad(a, ((0, rows - r), (0, cols - c)))


def _vmem_limit(resident_elems, streamed_elems_per_step, itemsize=4):
    resident = resident_elems * itemsize
    streamed = 2 * streamed_elems_per_step * itemsize  # double-buffered streams
    return int(min(max(2 * (resident + streamed), 32 << 20), 60 << 20))


# ---------------------------------------------------------------------------
# Kernel 1: feature projection   xw = x_strip @ W
# ---------------------------------------------------------------------------
def _project_kernel(x_ref, w_ref, o_ref):
    o_ref[...] = jnp.dot(
        x_ref[...], w_ref[...], preferred_element_type=jnp.float32
    ).astype(o_ref.dtype)


# ---------------------------------------------------------------------------
# Kernel 2: aggregate + bias + relu + next-layer projection
#   o = relu(adj_strip @ xw1 + b1) @ W2
# ---------------------------------------------------------------------------
def _agg_relu_project_kernel(adj_ref, xw_ref, b_ref, w2_ref, o_ref):
    h = jnp.dot(adj_ref[...], xw_ref[...], preferred_element_type=jnp.float32)
    h = jnp.maximum(h + b_ref[...].astype(jnp.float32), 0.0)
    o_ref[...] = jnp.dot(
        h.astype(w2_ref.dtype), w2_ref[...], preferred_element_type=jnp.float32
    ).astype(o_ref.dtype)


# ---------------------------------------------------------------------------
# Kernel 3: aggregate + bias + masked log_softmax
#   o = log_softmax(adj_strip @ xw2 + b2)
# ---------------------------------------------------------------------------
def _agg_logsoftmax_kernel(adj_ref, xw_ref, b_ref, o_ref, *, valid_cols):
    h = jnp.dot(adj_ref[...], xw_ref[...], preferred_element_type=jnp.float32)
    h = h + b_ref[...].astype(jnp.float32)
    # mask padded class columns so they do not contribute to the softmax
    cols = lax.broadcasted_iota(jnp.int32, h.shape, 1)
    h = jnp.where(cols < valid_cols, h, jnp.float32(-1e30))
    m = jnp.max(h, axis=-1, keepdims=True)
    e = jnp.exp(h - m)
    lse = m + jnp.log(jnp.sum(e, axis=-1, keepdims=True))
    o_ref[...] = (h - lse).astype(o_ref.dtype)


# ---------------------------------------------------------------------------
# Full GCN_MG forward (eval mode: dropout == identity)
# ---------------------------------------------------------------------------
def gcn_mg_forward(x, adj, w1, b1, w2, b2, *, tm=256):
    """x: [N, nfeat], adj: [N, N] -> log-probs [N, nclass]."""
    N, F = x.shape
    H = w1.shape[1]
    C = w2.shape[1]
    dtype = x.dtype
    itemsize = 4

    # --- padded shapes -----------------------------------------------------
    n8 = _round_up(N, 8)
    tm = max(8, min(tm, n8))        # row-strip tile; multiple of 8
    tm = (tm // 8) * 8
    Np = _round_up(N, tm)           # padded node count (rows & cols of adj)
    Fp = _round_up(F, 128)          # lane-dense input feature dim
    Hp = _round_up(H, 128)          # lane-dense hidden dim
    Cp = _round_up(C, 128)          # lane-dense class dim

    adj_p = _pad2d(adj, Np, Np)
    x_p = _pad2d(x, Np, Fp)
    w1_p = _pad2d(w1, Fp, Hp)
    b1_p = _pad2d(b1.reshape(1, H), 1, Hp)
    w2_p = _pad2d(w2, Hp, Cp)
    b2_p = _pad2d(b2.reshape(1, C), 1, Cp)

    grid = (Np // tm,)
    par = pltpu.CompilerParams(dimension_semantics=("parallel",))

    # ---- K1: xw1 = x @ W1 --------------------------------------------------
    xw1 = pl.pallas_call(
        _project_kernel,
        out_shape=jax.ShapeDtypeStruct((Np, Hp), dtype),
        grid_spec=pltpu.PrefetchScalarGridSpec(
            num_scalar_prefetch=0,
            grid=grid,
            in_specs=[
                pl.BlockSpec((tm, Fp), lambda i: (i, 0)),   # x strip (streamed)
                pl.BlockSpec((Fp, Hp), lambda i: (0, 0)),   # W1 (resident)
            ],
            out_specs=pl.BlockSpec((tm, Hp), lambda i: (i, 0)),
        ),
        compiler_params=pltpu.CompilerParams(
            dimension_semantics=("parallel",),
            vmem_limit_bytes=_vmem_limit(Fp * Hp, tm * Fp + tm * Hp, itemsize),
        ),
        cost_estimate=pl.CostEstimate(
            flops=2 * Np * Fp * Hp,
            transcendentals=0,
            bytes_accessed=itemsize * (Np * Fp + Fp * Hp + Np * Hp),
        ),
    )(x_p, w1_p)

    # ---- K2: xw2 = relu(adj @ xw1 + b1) @ W2 --------------------------------
    xw2 = pl.pallas_call(
        _agg_relu_project_kernel,
        out_shape=jax.ShapeDtypeStruct((Np, Cp), dtype),
        grid_spec=pltpu.PrefetchScalarGridSpec(
            num_scalar_prefetch=0,
            grid=grid,
            in_specs=[
                pl.BlockSpec((tm, Np), lambda i: (i, 0)),   # adj strip (streamed)
                pl.BlockSpec((Np, Hp), lambda i: (0, 0)),   # xw1 (resident)
                pl.BlockSpec((1, Hp), lambda i: (0, 0)),    # b1  (resident)
                pl.BlockSpec((Hp, Cp), lambda i: (0, 0)),   # W2  (resident)
            ],
            out_specs=pl.BlockSpec((tm, Cp), lambda i: (i, 0)),
        ),
        compiler_params=pltpu.CompilerParams(
            dimension_semantics=("parallel",),
            vmem_limit_bytes=_vmem_limit(
                Np * Hp + Hp + Hp * Cp, tm * Np + tm * Cp, itemsize
            ),
        ),
        cost_estimate=pl.CostEstimate(
            flops=2 * Np * Np * Hp + 2 * Np * Hp * Cp,
            transcendentals=0,
            bytes_accessed=itemsize
            * (Np * Np + Np * Hp + Hp + Hp * Cp + Np * Cp),
        ),
    )(adj_p, xw1, b1_p, w2_p)

    # ---- K3: out = log_softmax(adj @ xw2 + b2) -------------------------------
    out = pl.pallas_call(
        functools.partial(_agg_logsoftmax_kernel, valid_cols=C),
        out_shape=jax.ShapeDtypeStruct((Np, Cp), dtype),
        grid_spec=pltpu.PrefetchScalarGridSpec(
            num_scalar_prefetch=0,
            grid=grid,
            in_specs=[
                pl.BlockSpec((tm, Np), lambda i: (i, 0)),   # adj strip (streamed)
                pl.BlockSpec((Np, Cp), lambda i: (0, 0)),   # xw2 (resident)
                pl.BlockSpec((1, Cp), lambda i: (0, 0)),    # b2  (resident)
            ],
            out_specs=pl.BlockSpec((tm, Cp), lambda i: (i, 0)),
        ),
        compiler_params=pltpu.CompilerParams(
            dimension_semantics=("parallel",),
            vmem_limit_bytes=_vmem_limit(Np * Cp + Cp, tm * Np + tm * Cp, itemsize),
        ),
        cost_estimate=pl.CostEstimate(
            flops=2 * Np * Np * Cp,
            transcendentals=Np * Cp + Np,
            bytes_accessed=itemsize * (Np * Np + Np * Cp + Cp + Np * Cp),
        ),
    )(adj_p, xw2, b2_p)

    return out[:N, :C]


# ---------------------------------------------------------------------------
# Deterministic parameter init mirroring Linear1.reset_parameters
#   kaiming_uniform_(mode='fan_out', a=sqrt(5)) on (in, out) weight
#     -> bound = sqrt(2/(1+5)) * sqrt(3/out) = 1/sqrt(out)
#   bias ~ U(-1/sqrt(out), 1/sqrt(out))
# ---------------------------------------------------------------------------
def init_linear1_params(key, in_features, out_features, bias=True):
    kw, kb = jax.random.split(key)
    bound = 1.0 / math.sqrt(out_features)
    weight = jax.random.uniform(
        kw, (in_features, out_features), jnp.float32, -bound, bound
    )
    if bias:
        stdv = 1.0 / math.sqrt(out_features)
        b = jax.random.uniform(kb, (out_features,), jnp.float32, -stdv, stdv)
    else:
        b = None
    return weight, b


# ---------------------------------------------------------------------------
if __name__ == "__main__":
    key = jax.random.PRNGKey(0)
    k_adj, k_x, k_p1, k_p2 = jax.random.split(key, 4)

    num_nodes, nfeat, nhid, nclass = 32, 48, 32, 7  # small, non-aligned on purpose

    # node features
    x = jax.random.normal(k_x, (num_nodes, nfeat), jnp.float32)

    # symmetric row-normalized adjacency with self-loops (typical GCN preprocessing)
    a = (jax.random.uniform(k_adj, (num_nodes, num_nodes)) < 0.15).astype(jnp.float32)
    a = jnp.maximum(a, a.T) + jnp.eye(num_nodes, dtype=jnp.float32)
    adj = a / jnp.sum(a, axis=1, keepdims=True)

    w1, b1 = init_linear1_params(k_p1, nfeat, nhid, bias=True)
    w2, b2 = init_linear1_params(k_p2, nhid, nclass, bias=True)

    out = gcn_mg_forward(x, adj, w1, b1, w2, b2)
    out = jax.block_until_ready(out)

    # plain-JAX reference (eval mode: dropout is identity)
    x1_ref = jax.nn.relu((adj @ x) @ w1 + b1)
    ref = jax.nn.log_softmax((adj @ x1_ref) @ w2 + b2, axis=-1)

    assert out.shape == (num_nodes, nclass)
    assert jnp.allclose(out, ref, atol=1e-3, rtol=1e-3), (
        float(jnp.max(jnp.abs(out - ref)))
    )

    print("KERNEL_OK")
</pallas_src>

<mosaic_0001>
module attributes {stable_mosaic.version = 11 : i64} {
  func.func @_project_kernel(%arg0: i32, %arg1: memref<32x128xf32, #tpu.memory_space<vmem>>, %arg2: memref<128x128xf32, #tpu.memory_space<vmem>>, %arg3: memref<32x128xf32, #tpu.memory_space<vmem>>) attributes {dimension_semantics = [#tpu.dimension_semantics<parallel>], iteration_bounds = array<i64: 1>, scalar_prefetch = 0 : i64, scratch_operands = 0 : i64, tpu.core_type = #tpu.core_type<tc>, window_params = [{transform_indices = @transform_0, window_bounds = array<i64: 32, 128>}, {pipeline_mode = #tpu.pipeline_mode<synchronous>, transform_indices = @transform_1, window_bounds = array<i64: 128, 128>}, {transform_indices = @transform_2, window_bounds = array<i64: 32, 128>}]} {
    %c0 = arith.constant 0 : index
    %c0_0 = arith.constant 0 : index
    %0 = vector.load %arg1[%c0, %c0_0] : memref<32x128xf32, #tpu.memory_space<vmem>>, vector<32x128xf32>
    %c0_1 = arith.constant 0 : index
    %c0_2 = arith.constant 0 : index
    %1 = vector.load %arg2[%c0_1, %c0_2] : memref<128x128xf32, #tpu.memory_space<vmem>>, vector<128x128xf32>
    %cst = arith.constant dense<0.000000e+00> : vector<32x128xf32>
    %2 = tpu.matmul %0, %1, %cst {dimension_numbers = #tpu.dot_dimension_numbers<[1], [0], [0], [1], [0, 0, 1, 1], [], []>} : vector<32x128xf32>, vector<128x128xf32>, vector<32x128xf32> -> vector<32x128xf32>
    %c0_3 = arith.constant 0 : index
    %c0_4 = arith.constant 0 : index
    %3 = vector.load %arg3[%c0_3, %c0_4] : memref<32x128xf32, #tpu.memory_space<vmem>>, vector<32x128xf32>
    tpu.vector_store %arg3[%c0_3, %c0_4], %2 {strides = array<i32>} : memref<32x128xf32, #tpu.memory_space<vmem>>, vector<32x128xf32>,
    return
  }
  func.func @transform_0(%arg0: i32) -> (i32, i32) {
    %c0_i32 = arith.constant 0 : i32
    %c0_i32_0 = arith.constant 0 : i32
    return %arg0, %c0_i32 : i32, i32
  }
  func.func @transform_1(%arg0: i32) -> (i32, i32) {
    %c0_i32 = arith.constant 0 : i32
    %c0_i32_0 = arith.constant 0 : i32
    %c0_i32_1 = arith.constant 0 : i32
    return %c0_i32, %c0_i32_0 : i32, i32
  }
  func.func @transform_2(%arg0: i32) -> (i32, i32) {
    %c0_i32 = arith.constant 0 : i32
    %c0_i32_0 = arith.constant 0 : i32
    return %arg0, %c0_i32 : i32, i32
  }
}

</mosaic_0001>

<llo_original>
// kernel: tpu_custom_call.1
$region0: #{tpu_custom_call.1}
  #allocation0 [shape = 'u32[]', space=smem, size = 0x4, offset = 0x4, fixed_abs, tag = 'smem constant byte address 0x4 - core index']
  #allocation1 [shape = 'u32[144,128]{1,0:T(1,128)}', space=vmem, size = 0x12000, scoped, tag = 'internal scratch']
  %s0 = inlined_call_operand.hbm [shape: f32[32,128], index: 0, kind: input, shape index: {}]
  %s1 = inlined_call_operand.hbm [shape: f32[128,128], index: 1, kind: input, shape index: {}]
  %s2 = inlined_call_operand.hbm [shape: f32[32,128], index: 2, kind: output, shape index: {}]
  %s3 = sld [smem:[#allocation0]]
  $region26: #{tpu_custom_call.1} parent=0
    _
  %s5 = ssub.s32 1, %s3
  %s6 = scalar_select 0, %s5, %s3
  $region1: #{tpu_custom_call.1} parent=0
    #allocation2 [shape = 'u8[16384]{0}', space=vmem, size = 0x4000, scoped, tag = 'input window, operand 0, single buffered']
    #allocation3 [shape = 's32[1]{0}', space=sflag, size = 0x4, scoped, tag = 'scoped memory for tpu_custom_call.1']
    #allocation4 [shape = 's32[1]{0}', space=sflag, size = 0x4, scoped, tag = 'scoped memory for tpu_custom_call.1']
    #allocation5 [shape = 'u8[65536]{0}', space=vmem, size = 0x10000, scoped, tag = 'input window, operand 1, single buffered']
    #allocation6 [shape = 's32[1]{0}', space=sflag, size = 0x4, scoped, tag = 'scoped memory for tpu_custom_call.1']
    #allocation7 [shape = 'u8[16384]{0}', space=vmem, size = 0x4000, scoped, tag = 'output window, operand 0, single buffered']
    %7 = vsyncpa [#allocation3], 0
    %8 = vsyncpa [#allocation6], 0
    %9 = vsyncpa [#allocation4], 0
    // Predicated region
    $region2: #{tpu_custom_call.1} parent=1 // pred_check
      _
    $region3: #{tpu_custom_call.1} parent=1 // pred_check_branch
      %11 = sbr.rel (0) target = $region5
    $region4: #{tpu_custom_call.1} parent=1 // pred_region
      %s13 = ssub.s32 512, 512
      %14 = vsyncadd [#allocation3], %s13
      %s15 = sshll.u32 [#allocation2], 4
      %s16 = int_to_ptr.vmem [resolvable:$true] %s15
      %21 = dma.hbm_to_vmem [thread:$0]  %s0, 512, %s16, [#allocation3], 128, 128, 8
    $region5: #{tpu_custom_call.1} parent=1 // pred_fallthru
      _
    // Predicated region
    $region6: #{tpu_custom_call.1} parent=1 // pred_check
      _
    $region7: #{tpu_custom_call.1} parent=1 // pred_check_branch
      %23 = sbr.rel (0) target = $region9
    $region8: #{tpu_custom_call.1} parent=1 // pred_region
      %s25 = ssub.s32 2048, 2048
      %26 = vsyncadd [#allocation6], %s25
      %s27 = sshll.u32 [#allocation5], 4
      %s28 = int_to_ptr.vmem [resolvable:$true] %s27
      %33 = dma.hbm_to_vmem [thread:$0]  %s1, 2048, %s28, [#allocation6], 128, 128, 8
    $region9: #{tpu_custom_call.1} parent=1 // pred_fallthru
      _
    // Predicated region
    $region10: #{tpu_custom_call.1} parent=1 // pred_check
      _
    $region11: #{tpu_custom_call.1} parent=1 // pred_check_branch
      %35 = sbr.rel (0) target = $region13
    $region12: #{tpu_custom_call.1} parent=1 // pred_region
      %36 = dma.done [#allocation3], 512
    $region13: #{tpu_custom_call.1} parent=1 // pred_fallthru
      _
    // Predicated region
    $region14: #{tpu_custom_call.1} parent=1 // pred_check
      _
    $region15: #{tpu_custom_call.1} parent=1 // pred_check_branch
      %38 = sbr.rel (0) target = $region17
    $region16: #{tpu_custom_call.1} parent=1 // pred_region
      %39 = dma.done [#allocation6], 2048
    $region17: #{tpu_custom_call.1} parent=1 // pred_fallthru
      _
    %v40 = vld [vmem:[#allocation2] sm:$0xff]
    %v41 = vld [vmem:[#allocation2 + $0x8] sm:$0xff]
    %v42 = vld [vmem:[#allocation2 + $0x10] sm:$0xff]
    %v43 = vld [vmem:[#allocation2 + $0x18] sm:$0xff]
    %v44 = vld [vmem:[#allocation5] sm:$0xff]
    %v45 = vld [vmem:[#allocation5 + $0x8] sm:$0xff]
    %v46 = vld [vmem:[#allocation5 + $0x10] sm:$0xff]
    %v47 = vld [vmem:[#allocation5 + $0x18] sm:$0xff]
    %v48 = vld [vmem:[#allocation5 + $0x20] sm:$0xff]
    %v49 = vld [vmem:[#allocation5 + $0x28] sm:$0xff]
    %v50 = vld [vmem:[#allocation5 + $0x30] sm:$0xff]
    %v51 = vld [vmem:[#allocation5 + $0x38] sm:$0xff]
    %v52 = vld [vmem:[#allocation5 + $0x40] sm:$0xff]
    %v53 = vld [vmem:[#allocation5 + $0x48] sm:$0xff]
    %v54 = vld [vmem:[#allocation5 + $0x50] sm:$0xff]
    %v55 = vld [vmem:[#allocation5 + $0x58] sm:$0xff]
    %v56 = vld [vmem:[#allocation5 + $0x60] sm:$0xff]
    %v57 = vld [vmem:[#allocation5 + $0x68] sm:$0xff]
    %v58 = vld [vmem:[#allocation5 + $0x70] sm:$0xff]
    %v59 = vld [vmem:[#allocation5 + $0x78] sm:$0xff]
    %60 = vmatprep.subr.mxu0 0.0
    %61 = vmatpush1.msra.mxu0 %v59
    %62 = vmatprep.subr.mxu0 0.0
    %63 = vmatpush1.msra.mxu0 %v58
    %64 = vmatprep.subr.mxu0 0.0
    %65 = vmatpush1.msra.mxu0 %v57
    %66 = vmatprep.subr.mxu0 0.0
    %67 = vmatpush1.msra.mxu0 %v56
    %68 = vmatprep.subr.mxu0 0.0
    %69 = vmatpush1.msra.mxu0 %v55
    %70 = vmatprep.subr.mxu0 0.0
    %71 = vmatpush1.msra.mxu0 %v54
    %72 = vmatprep.subr.mxu0 0.0
    %73 = vmatpush1.msra.mxu0 %v53
    %74 = vmatprep.subr.mxu0 0.0
    %75 = vmatpush1.msra.mxu0 %v52
    %76 = vmatprep.subr.mxu0 0.0
    %77 = vmatpush1.msra.mxu0 %v51
    %78 = vmatprep.subr.mxu0 0.0
    %79 = vmatpush1.msra.mxu0 %v50
    %80 = vmatprep.subr.mxu0 0.0
    %81 = vmatpush1.msra.mxu0 %v49
    %82 = vmatprep.subr.mxu0 0.0
    %83 = vmatpush1.msra.mxu0 %v48
    %84 = vmatprep.subr.mxu0 0.0
    %85 = vmatpush1.msra.mxu0 %v47
    %86 = vmatprep.subr.mxu0 0.0
    %87 = vmatpush1.msra.mxu0 %v46
    %88 = vmatprep.subr.mxu0 0.0
    %89 = vmatpush1.msra.mxu0 %v45
    %90 = vmatprep.subr.mxu0 0.0
    %91 = vmatpush1.msra.mxu0 %v44
    %92 = vmatprep.subr.mxu0 0.0
    %93 = vmatpush2.msra.mxu0 0.0
    %94 = vmatprep.subr.mxu0 0.0
    %95 = vmatpush2.msra.mxu0 0.0
    %96 = vmatprep.subr.mxu0 0.0
    %97 = vmatpush2.msra.mxu0 0.0
    %98 = vmatprep.subr.mxu0 0.0
    %99 = vmatpush2.msra.mxu0 0.0
    %100 = vmatprep.subr.mxu0 0.0
    %101 = vmatpush2.msra.mxu0 0.0
    %102 = vmatprep.subr.mxu0 0.0
    %103 = vmatpush2.msra.mxu0 0.0
    %104 = vmatprep.subr.mxu0 0.0
    %105 = vmatpush2.msra.mxu0 0.0
    %106 = vmatprep.subr.mxu0 0.0
    %107 = vmatpush2.msra.mxu0 0.0
    %108 = vmatprep.subr.mxu0 0.0
    %109 = vmatpush2.msra.mxu0 0.0
    %110 = vmatprep.subr.mxu0 0.0
    %111 = vmatpush2.msra.mxu0 0.0
    %112 = vmatprep.subr.mxu0 0.0
    %113 = vmatpush2.msra.mxu0 0.0
    %114 = vmatprep.subr.mxu0 0.0
    %115 = vmatpush2.msra.mxu0 0.0
    %116 = vmatprep.subr.mxu0 0.0
    %117 = vmatpush2.msra.mxu0 0.0
    %118 = vmatprep.subr.mxu0 0.0
    %119 = vmatpush2.msra.mxu0 0.0
    %120 = vmatprep.subr.mxu0 0.0
    %121 = vmatpush2.msra.mxu0 0.0
    %122 = vmatprep.subr.mxu0 0.0
    %123 = vmatpush2.msra.mxu0 0.0
    %124 = vmatprep.mubr.f32.mxu0 0.0
    %125 = vmatmul.mubr.f32.gmra.mxu0 %v40
    %v126 = vpop.f32.mrf.mxu0
    %v127 = vadd.f32 0.0, %v126
    %v128 = vpop.f32.mrf.mxu0
    %129 = vmatprep.mubr.f32.mxu0 0.0
    %130 = vmatmul.mubr.f32.gmra.mxu0 %v41
    %v131 = vpop.f32.mrf.mxu0
    %v132 = vadd.f32 0.0, %v131
    %v133 = vpop.f32.mrf.mxu0
    %134 = vmatprep.mubr.f32.mxu0 0.0
    %135 = vmatmul.mubr.f32.gmra.mxu0 %v42
    %v136 = vpop.f32.mrf.mxu0
    %v137 = vadd.f32 0.0, %v136
    %v138 = vpop.f32.mrf.mxu0
    %139 = vmatprep.mubr.f32.mxu0 0.0
    %140 = vmatmul.mubr.f32.gmra.mxu0 %v43
    %v141 = vpop.f32.mrf.mxu0
    %v142 = vadd.f32 0.0, %v141
    %v143 = vpop.f32.mrf.mxu0
    %144 = vdwg.mxu0
    %145 = vst [vmem:[#allocation7] sm:$0xff] %v127
    %146 = vst [vmem:[#allocation7 + $0x8] sm:$0xff] %v132
    %147 = vst [vmem:[#allocation7 + $0x10] sm:$0xff] %v137
    %148 = vst [vmem:[#allocation7 + $0x18] sm:$0xff] %v142
    // Predicated region
    $region18: #{tpu_custom_call.1} parent=1 // pred_check
      _
    $region19: #{tpu_custom_call.1} parent=1 // pred_check_branch
      %150 = sbr.rel (0) target = $region21
    $region20: #{tpu_custom_call.1} parent=1 // pred_region
      %s152 = ssub.s32 512, 512
      %153 = vsyncadd [#allocation4], %s152
      %s154 = sshll.u32 [#allocation7], 4
      %s155 = int_to_ptr.vmem [resolvable:$true] %s154
      %160 = dma.vmem_to_hbm [thread:$0]  %s155, 512, %s2, [#allocation4], 128, 128, 8
    $region21: #{tpu_custom_call.1} parent=1 // pred_fallthru
      _
    // Predicated region
    $region22: #{tpu_custom_call.1} parent=1 // pred_check
      _
    $region23: #{tpu_custom_call.1} parent=1 // pred_check_branch
      %162 = sbr.rel (0) target = $region25
    $region24: #{tpu_custom_call.1} parent=1 // pred_region
      %163 = dma.done [#allocation4], 512
    $region25: #{tpu_custom_call.1} parent=1 // pred_fallthru
      _
    %164 = vsyncpa [#allocation3], 1
    %165 = vsyncpa [#allocation6], 1
    %166 = vsyncpa [#allocation4], 1

</llo_original>
